<compile_context>
chip_gen: v6e
topology: v6e:2x2x1
jax: 0.10.0
libtpu: 0.0.40
codegen_flags: <defaults>
</compile_context>

<pallas_src>
import functools

import jax
import jax.numpy as jnp
from jax.experimental import pallas as pl
from jax.experimental.pallas import tpu as pltpu


def _round_up(x, m):
    return (x + m - 1) // m * m


def _mlgru_kernel(x_ref, w_ref, b_ref, out_ref, h_ref, *, eps, tile_t):
    @pl.when(pl.program_id(0) == 0)
    def _():
        h_ref[...] = jnp.zeros_like(h_ref)

    x = x_ref[...]                      # (B, TILE_T, D) float32
    b_dim, tt, d = x.shape
    h_pad = out_ref.shape[2]

    # ---- RMSNormFunction.forward (mean-centered, unbiased=False variance) ----
    mean = jnp.mean(x, axis=-1, keepdims=True)
    centered = x - mean
    var = jnp.mean(centered * centered, axis=-1, keepdims=True)
    # Kept as exact 1/sqrt (not approx rsqrt): this value feeds round() in the
    # quantizer and an approximate rsqrt can flip quantization buckets vs. the
    # PyTorch reference.  A handful of EUP ops per chunk, off the critical path.
    r = 1.0 / jnp.sqrt(jnp.maximum(var + eps, 1e-10))
    xn = r * centered

    # ---- activation_quant: per-timestep global abs-max over (B, D), 8-bit ----
    xn = jnp.where(jnp.isnan(xn), 0.0, xn)
    amax = jnp.max(jnp.abs(xn), axis=2, keepdims=True)      # (B, TILE_T, 1)
    amax = jnp.max(amax, axis=0, keepdims=True)             # (1, TILE_T, 1)
    scale = jnp.where((amax == 0.0) | jnp.isnan(amax), 1.0, amax / 127.0)
    x_int = jnp.clip(jnp.round(xn / scale), -128.0, 127.0)  # exact small ints

    # ---- fused ternary matmul on the MXU (bf16 ints x bf16 signs, f32 acc) ---
    # TODO(synk): on v5e/v6e an int8 weight/activation path would further cut
    # weight DMA/VMEM 4x (do not port to v7x: its MXU dropped int support).
    x_mat = x_int.reshape(b_dim * tt, d).astype(jnp.bfloat16)
    lin = jnp.dot(x_mat, w_ref[...], preferred_element_type=jnp.float32)
    lin = lin.reshape(b_dim, tt, 3 * h_pad) * scale + b_ref[...].reshape(1, 1, -1)

    f_lin = lin[:, :, 0 * h_pad:1 * h_pad]
    c_lin = lin[:, :, 1 * h_pad:2 * h_pad]
    g_lin = lin[:, :, 2 * h_pad:3 * h_pad]

    # ---- gates: all EUP (sigmoid / silu) work vectorized over the chunk ------
    sig_f = jax.nn.sigmoid(f_lin)
    silu_c = c_lin * jax.nn.sigmoid(c_lin)
    sig_g = jax.nn.sigmoid(g_lin)
    # Pre-compute the additive recurrence term vectorized, so the serial loop
    # below is a single FMA per timestep (shortest possible dependency chain).
    add_t = (1.0 - sig_f) * silu_c

    # ---- serial elementwise recurrence over the chunk (pure VPU FMA) ---------
    h = h_ref[...]
    for t in range(tile_t):             # static unroll; slices are static
        h = sig_f[:, t, :] * h + add_t[:, t, :]
        out_ref[:, t, :] = h * sig_g[:, t, :]
    h_ref[...] = h


def mlgru_layer(x_btd, w_f, w_c, w_g, b_f, b_c, b_g, eps=1e-8, tile_t=32):
    """x_btd: (B, T, D) float32.  Returns (B, T, H) float32 (H == D here)."""
    B, T, D = x_btd.shape
    H = w_f.shape[1]
    assert D == H, "matmul_free_linear in the reference requires input==hidden"

    h_pad = _round_up(H, 128)                           # lane-dense N / stores
    tile_t = min(_round_up(tile_t, 8), _round_up(T, 8))
    t_pad = _round_up(T, tile_t)

    x = x_btd.astype(jnp.float32)
    if t_pad != T:
        x = jnp.pad(x, ((0, 0), (0, t_pad - T), (0, 0)))   # trailing zero steps

    # Hoist ternarization + transpose out of the kernel; fuse the three gate
    # weights into a single (D, 3*H_pad) bf16 operand, biases into (1, 3*H_pad).
    def prep_w(w):
        y = jnp.sign(w).T.astype(jnp.bfloat16)           # ternary, pre-transposed
        return jnp.pad(y, ((0, 0), (0, h_pad - H)))

    def prep_b(b):
        return jnp.pad(b.astype(jnp.float32), (0, h_pad - H))

    w_fused = jnp.concatenate([prep_w(w_f), prep_w(w_c), prep_w(w_g)], axis=1)
    b_fused = jnp.concatenate([prep_b(b_f), prep_b(b_c), prep_b(b_g)]
                              ).reshape(1, 3 * h_pad)

    kernel = functools.partial(_mlgru_kernel, eps=eps, tile_t=tile_t)

    out = pl.pallas_call(
        kernel,
        out_shape=jax.ShapeDtypeStruct((B, t_pad, h_pad), jnp.float32),
        grid_spec=pltpu.PrefetchScalarGridSpec(
            num_scalar_prefetch=0,
            grid=(t_pad // tile_t,),
            in_specs=[
                # x: (B, T, D) layout kept as-is; time chunked via middle axis.
                pl.BlockSpec((B, tile_t, D), lambda t: (0, t, 0)),
                # Fused weights / biases: constant index_map => DMA'd once and
                # kept resident across the whole time loop.
                # TODO(synk): for very large D on v7x (64 MiB VMEM), single-
                # buffer these (pipeline_mode=pl.Buffered(1)) or K-tile them.
                pl.BlockSpec((D, 3 * h_pad), lambda t: (0, 0)),
                pl.BlockSpec((1, 3 * h_pad), lambda t: (0, 0)),
            ],
            out_specs=pl.BlockSpec((B, tile_t, h_pad), lambda t: (0, t, 0)),
            scratch_shapes=[pltpu.VMEM((B, h_pad), jnp.float32)],   # h_t carry
        ),
        compiler_params=pltpu.CompilerParams(
            # The recurrence is sequential over time chunks.
            # TODO(synk): for large B on v7x add a leading "parallel" batch
            # grid axis so the second TensorCore runs an independent recurrence.
            dimension_semantics=("arbitrary",),
        ),
    )(x, w_fused, b_fused)

    return out[:, :T, :H]


# ---------------- pure-JAX reference (mirrors the PyTorch code) ----------------
def _ref_mlgru(x_btd, w_f, w_c, w_g, b_f, b_c, b_g, eps=1e-8):
    B, T, D = x_btd.shape
    H = w_f.shape[1]

    def act_quant(x):
        x = jnp.where(jnp.isnan(x), 0.0, x)
        amax = jnp.max(jnp.abs(x))
        scale = jnp.where((amax == 0.0) | jnp.isnan(amax), 1.0, amax / 127.0)
        return jnp.clip(jnp.round(x / scale), -128.0, 127.0) * scale

    def rmsn(x):
        mean = jnp.mean(x, axis=-1, keepdims=True)
        var = jnp.mean((x - mean) ** 2, axis=-1, keepdims=True)
        r = 1.0 / jnp.sqrt(jnp.maximum(var + eps, 1e-10))
        return r * (x - mean)

    h = jnp.zeros((B, H), jnp.float32)
    outs = []
    for t in range(T):
        xt = rmsn(x_btd[:, t, :])
        xq = act_quant(xt)
        f = xq @ jnp.sign(w_f).T + b_f
        c = xq @ jnp.sign(w_c).T + b_c
        g = xq @ jnp.sign(w_g).T + b_g
        sf = jax.nn.sigmoid(f)
        sc = c * jax.nn.sigmoid(c)
        sg = jax.nn.sigmoid(g)
        h = sf * h + (1.0 - sf) * sc
        outs.append(h * sg)
    return jnp.stack(outs, axis=1)


if __name__ == "__main__":
    key = jax.random.PRNGKey(0)
    B, T, D = 2, 8, 32
    H = D  # reference code implies input_size == hidden_size

    ks = jax.random.split(key, 7)
    x = jax.random.normal(ks[0], (B, T, D), jnp.float32)
    w_f = jax.random.normal(ks[1], (D, H), jnp.float32)
    w_c = jax.random.normal(ks[2], (D, H), jnp.float32)
    w_g = jax.random.normal(ks[3], (D, H), jnp.float32)
    b_f = jax.random.normal(ks[4], (H,), jnp.float32)
    b_c = jax.random.normal(ks[5], (H,), jnp.float32)
    b_g = jax.random.normal(ks[6], (H,), jnp.float32)

    out = mlgru_layer(x, w_f, w_c, w_g, b_f, b_c, b_g)
    out = jax.block_until_ready(out)

    ref = _ref_mlgru(x, w_f, w_c, w_g, b_f, b_c, b_g)
    assert out.shape == (B, T, H)
    assert jnp.allclose(out, ref, atol=1e-4, rtol=1e-4), "mismatch vs reference"
    print("KERNEL_OK")
</pallas_src>

<mosaic_0001>
module attributes {stable_mosaic.version = 11 : i64} {
  func.func @_mlgru_kernel(%arg0: i32, %arg1: memref<2x8x32xf32, #tpu.memory_space<vmem>>, %arg2: memref<32x384xbf16, #tpu.memory_space<vmem>>, %arg3: memref<1x384xf32, #tpu.memory_space<vmem>>, %arg4: memref<2x8x128xf32, #tpu.memory_space<vmem>>, %arg5: memref<2x128xf32, #tpu.memory_space<vmem>>) attributes {dimension_semantics = [#tpu.dimension_semantics<arbitrary>], iteration_bounds = array<i64: 1>, scalar_prefetch = 0 : i64, scratch_operands = 1 : i64, tpu.core_type = #tpu.core_type<tc>, window_params = [{transform_indices = @transform_0, window_bounds = array<i64: 2, 8, 32>}, {pipeline_mode = #tpu.pipeline_mode<synchronous>, transform_indices = @transform_1, window_bounds = array<i64: 32, 384>}, {pipeline_mode = #tpu.pipeline_mode<synchronous>, transform_indices = @transform_2, window_bounds = array<i64: 1, 384>}, {transform_indices = @transform_3, window_bounds = array<i64: 2, 8, 128>}]} {
    %c0_i32 = arith.constant 0 : i32
    %0 = arith.cmpi eq, %arg0, %c0_i32 : i32
    %1 = arith.extui %0 : i1 to i32
    %c0_i32_0 = arith.constant 0 : i32
    %2 = arith.cmpi ne, %1, %c0_i32_0 : i32
    scf.if %2 {
      %cst_47 = arith.constant 0.000000e+00 : f32
      %178 = vector.broadcast %cst_47 : f32 to vector<2x128xf32>
      %c0_48 = arith.constant 0 : index
      %c0_49 = arith.constant 0 : index
      %179 = vector.load %arg5[%c0_48, %c0_49] : memref<2x128xf32, #tpu.memory_space<vmem>>, vector<2x128xf32>
      tpu.vector_store %arg5[%c0_48, %c0_49], %178 {strides = array<i32>} : memref<2x128xf32, #tpu.memory_space<vmem>>, vector<2x128xf32>,
    } else {
    }
    %c0 = arith.constant 0 : index
    %c0_1 = arith.constant 0 : index
    %c0_2 = arith.constant 0 : index
    %3 = vector.load %arg1[%c0, %c0_1, %c0_2] : memref<2x8x32xf32, #tpu.memory_space<vmem>>, vector<2x8x32xf32>
    %cst = arith.constant dense<0.000000e+00> : vector<2x8xf32>
    %4 = vector.multi_reduction <add>, %3, %cst [2] : vector<2x8x32xf32> to vector<2x8xf32>
    %5 = vector.shape_cast %4 : vector<2x8xf32> to vector<2x8x1xf32>
    %cst_3 = arith.constant 3.200000e+01 : f32
    %6 = vector.broadcast %cst_3 : f32 to vector<2x8x1xf32>
    %7 = arith.divf %5, %6 : vector<2x8x1xf32>
    %8 = vector.broadcast %7 : vector<2x8x1xf32> to vector<2x8x32xf32>
    %9 = arith.subf %3, %8 : vector<2x8x32xf32>
    %10 = arith.mulf %9, %9 : vector<2x8x32xf32>
    %cst_4 = arith.constant dense<0.000000e+00> : vector<2x8xf32>
    %11 = vector.multi_reduction <add>, %10, %cst_4 [2] : vector<2x8x32xf32> to vector<2x8xf32>
    %12 = vector.shape_cast %11 : vector<2x8xf32> to vector<2x8x1xf32>
    %cst_5 = arith.constant 3.200000e+01 : f32
    %13 = vector.broadcast %cst_5 : f32 to vector<2x8x1xf32>
    %14 = arith.divf %12, %13 : vector<2x8x1xf32>
    %cst_6 = arith.constant 9.99999993E-9 : f32
    %15 = vector.broadcast %cst_6 : f32 to vector<2x8x1xf32>
    %16 = arith.addf %14, %15 : vector<2x8x1xf32>
    %cst_7 = arith.constant 1.000000e-10 : f32
    %17 = vector.broadcast %cst_7 : f32 to vector<2x8x1xf32>
    %18 = arith.maximumf %16, %17 : vector<2x8x1xf32>
    %19 = math.sqrt %18 : vector<2x8x1xf32>
    %cst_8 = arith.constant 1.000000e+00 : f32
    %20 = vector.broadcast %cst_8 : f32 to vector<2x8x1xf32>
    %21 = arith.divf %20, %19 : vector<2x8x1xf32>
    %22 = vector.broadcast %21 : vector<2x8x1xf32> to vector<2x8x32xf32>
    %23 = arith.mulf %22, %9 : vector<2x8x32xf32>
    %24 = arith.cmpf one, %23, %23 : vector<2x8x32xf32>
    %cst_9 = arith.constant 0.000000e+00 : f32
    %25 = vector.broadcast %cst_9 : f32 to vector<2x8x32xf32>
    %26 = arith.select %24, %25, %23 : vector<2x8x32xi1>, vector<2x8x32xf32>
    %27 = math.absf %26 : vector<2x8x32xf32>
    %cst_10 = arith.constant dense<0xFF800000> : vector<2x8xf32>
    %28 = vector.multi_reduction <maximumf>, %27, %cst_10 [2] : vector<2x8x32xf32> to vector<2x8xf32>
    %29 = vector.shape_cast %28 : vector<2x8xf32> to vector<2x8x1xf32>
    %cst_11 = arith.constant dense<0xFF800000> : vector<8x1xf32>
    %30 = vector.multi_reduction <maximumf>, %29, %cst_11 [0] : vector<2x8x1xf32> to vector<8x1xf32>
    %31 = vector.shape_cast %30 : vector<8x1xf32> to vector<1x8x1xf32>
    %cst_12 = arith.constant 0.000000e+00 : f32
    %32 = vector.broadcast %cst_12 : f32 to vector<1x8x1xf32>
    %33 = arith.cmpf oeq, %31, %32 : vector<1x8x1xf32>
    %34 = arith.cmpf one, %31, %31 : vector<1x8x1xf32>
    %35 = arith.ori %33, %34 : vector<1x8x1xi1>
    %cst_13 = arith.constant 1.270000e+02 : f32
    %36 = vector.broadcast %cst_13 : f32 to vector<1x8x1xf32>
    %37 = arith.divf %31, %36 : vector<1x8x1xf32>
    %cst_14 = arith.constant 1.000000e+00 : f32
    %38 = vector.broadcast %cst_14 : f32 to vector<1x8x1xf32>
    %39 = arith.select %35, %38, %37 : vector<1x8x1xi1>, vector<1x8x1xf32>
    %40 = vector.broadcast %39 : vector<1x8x1xf32> to vector<2x8x32xf32>
    %41 = arith.divf %26, %40 : vector<2x8x32xf32>
    %42 = math.roundeven %41 : vector<2x8x32xf32>
    %cst_15 = arith.constant -1.280000e+02 : f32
    %cst_16 = arith.constant 1.270000e+02 : f32
    %43 = vector.broadcast %cst_15 : f32 to vector<2x8x32xf32>
    %44 = arith.maximumf %43, %42 : vector<2x8x32xf32>
    %45 = vector.broadcast %cst_16 : f32 to vector<2x8x32xf32>
    %46 = arith.minimumf %45, %44 : vector<2x8x32xf32>
    %47 = vector.shape_cast %46 : vector<2x8x32xf32> to vector<16x32xf32>
    %48 = arith.truncf %47 : vector<16x32xf32> to vector<16x32xbf16>
    %c0_17 = arith.constant 0 : index
    %c0_18 = arith.constant 0 : index
    %49 = vector.load %arg2[%c0_17, %c0_18] : memref<32x384xbf16, #tpu.memory_space<vmem>>, vector<32x384xbf16>
    %cst_19 = arith.constant dense<0.000000e+00> : vector<16x384xf32>
    %50 = tpu.matmul %48, %49, %cst_19 {dimension_numbers = #tpu.dot_dimension_numbers<[1], [0], [0], [1], [0, 0, 1, 1], [], []>} : vector<16x32xbf16>, vector<32x384xbf16>, vector<16x384xf32> -> vector<16x384xf32>
    %51 = vector.shape_cast %50 : vector<16x384xf32> to vector<2x8x384xf32>
    %52 = vector.broadcast %39 : vector<1x8x1xf32> to vector<2x8x384xf32>
    %53 = arith.mulf %51, %52 : vector<2x8x384xf32>
    %c0_20 = arith.constant 0 : index
    %c0_21 = arith.constant 0 : index
    %54 = vector.load %arg3[%c0_20, %c0_21] : memref<1x384xf32, #tpu.memory_space<vmem>>, vector<1x384xf32>
    %55 = vector.shape_cast %54 : vector<1x384xf32> to vector<1x1x384xf32>
    %56 = vector.broadcast %55 : vector<1x1x384xf32> to vector<2x8x384xf32>
    %57 = arith.addf %53, %56 : vector<2x8x384xf32>
    %58 = vector.extract_strided_slice %57 {offsets = [0, 0, 0], sizes = [2, 8, 128], strides = [1, 1, 1]} : vector<2x8x384xf32> to vector<2x8x128xf32>
    %59 = vector.extract_strided_slice %57 {offsets = [0, 0, 128], sizes = [2, 8, 128], strides = [1, 1, 1]} : vector<2x8x384xf32> to vector<2x8x128xf32>
    %60 = vector.extract_strided_slice %57 {offsets = [0, 0, 256], sizes = [2, 8, 128], strides = [1, 1, 1]} : vector<2x8x384xf32> to vector<2x8x128xf32>
    %61 = arith.negf %58 : vector<2x8x128xf32>
    %62 = math.exp %61 : vector<2x8x128xf32>
    %cst_22 = arith.constant 1.000000e+00 : f32
    %63 = vector.broadcast %cst_22 : f32 to vector<2x8x128xf32>
    %64 = arith.addf %63, %62 : vector<2x8x128xf32>
    %65 = arith.divf %63, %64 : vector<2x8x128xf32>
    %66 = arith.negf %59 : vector<2x8x128xf32>
    %67 = math.exp %66 : vector<2x8x128xf32>
    %cst_23 = arith.constant 1.000000e+00 : f32
    %68 = vector.broadcast %cst_23 : f32 to vector<2x8x128xf32>
    %69 = arith.addf %68, %67 : vector<2x8x128xf32>
    %70 = arith.divf %68, %69 : vector<2x8x128xf32>
    %71 = arith.mulf %59, %70 : vector<2x8x128xf32>
    %72 = arith.negf %60 : vector<2x8x128xf32>
    %73 = math.exp %72 : vector<2x8x128xf32>
    %cst_24 = arith.constant 1.000000e+00 : f32
    %74 = vector.broadcast %cst_24 : f32 to vector<2x8x128xf32>
    %75 = arith.addf %74, %73 : vector<2x8x128xf32>
    %76 = arith.divf %74, %75 : vector<2x8x128xf32>
    %cst_25 = arith.constant 1.000000e+00 : f32
    %77 = vector.broadcast %cst_25 : f32 to vector<2x8x128xf32>
    %78 = arith.subf %77, %65 : vector<2x8x128xf32>
    %79 = arith.mulf %78, %71 : vector<2x8x128xf32>
    %c0_26 = arith.constant 0 : index
    %c0_27 = arith.constant 0 : index
    %80 = vector.load %arg5[%c0_26, %c0_27] : memref<2x128xf32, #tpu.memory_space<vmem>>, vector<2x128xf32>
    %81 = vector.extract_strided_slice %65 {offsets = [0, 0, 0], sizes = [2, 1, 128], strides = [1, 1, 1]} : vector<2x8x128xf32> to vector<2x1x128xf32>
    %82 = vector.shape_cast %81 : vector<2x1x128xf32> to vector<2x128xf32>
    %83 = arith.mulf %82, %80 : vector<2x128xf32>
    %84 = vector.extract_strided_slice %79 {offsets = [0, 0, 0], sizes = [2, 1, 128], strides = [1, 1, 1]} : vector<2x8x128xf32> to vector<2x1x128xf32>
    %85 = vector.shape_cast %84 : vector<2x1x128xf32> to vector<2x128xf32>
    %86 = arith.addf %83, %85 : vector<2x128xf32>
    %87 = vector.extract_strided_slice %76 {offsets = [0, 0, 0], sizes = [2, 1, 128], strides = [1, 1, 1]} : vector<2x8x128xf32> to vector<2x1x128xf32>
    %88 = vector.shape_cast %87 : vector<2x1x128xf32> to vector<2x128xf32>
    %89 = arith.mulf %86, %88 : vector<2x128xf32>
    %c0_28 = arith.constant 0 : index
    %c0_29 = arith.constant 0 : index
    %c0_30 = arith.constant 0 : index
    %90 = vector.load %arg4[%c0_28, %c0_29, %c0_30] : memref<2x8x128xf32, #tpu.memory_space<vmem>>, vector<2x1x128xf32>
    %91 = vector.shape_cast %90 : vector<2x1x128xf32> to vector<2x128xf32>
    %92 = vector.shape_cast %89 : vector<2x128xf32> to vector<2x1x128xf32>
    tpu.vector_store %arg4[%c0_28, %c0_29, %c0_30], %92 {strides = array<i32>} : memref<2x8x128xf32, #tpu.memory_space<vmem>>, vector<2x1x128xf32>,
    %93 = vector.extract_strided_slice %65 {offsets = [0, 1, 0], sizes = [2, 1, 128], strides = [1, 1, 1]} : vector<2x8x128xf32> to vector<2x1x128xf32>
    %94 = vector.shape_cast %93 : vector<2x1x128xf32> to vector<2x128xf32>
    %95 = arith.mulf %94, %86 : vector<2x128xf32>
    %96 = vector.extract_strided_slice %79 {offsets = [0, 1, 0], sizes = [2, 1, 128], strides = [1, 1, 1]} : vector<2x8x128xf32> to vector<2x1x128xf32>
    %97 = vector.shape_cast %96 : vector<2x1x128xf32> to vector<2x128xf32>
    %98 = arith.addf %95, %97 : vector<2x128xf32>
    %99 = vector.extract_strided_slice %76 {offsets = [0, 1, 0], sizes = [2, 1, 128], strides = [1, 1, 1]} : vector<2x8x128xf32> to vector<2x1x128xf32>
    %100 = vector.shape_cast %99 : vector<2x1x128xf32> to vector<2x128xf32>
    %101 = arith.mulf %98, %100 : vector<2x128xf32>
    %c0_31 = arith.constant 0 : index
    %c1 = arith.constant 1 : index
    %c0_32 = arith.constant 0 : index
    %102 = vector.load %arg4[%c0_31, %c1, %c0_32] : memref<2x8x128xf32, #tpu.memory_space<vmem>>, vector<2x1x128xf32>
    %103 = vector.shape_cast %102 : vector<2x1x128xf32> to vector<2x128xf32>
    %104 = vector.shape_cast %101 : vector<2x128xf32> to vector<2x1x128xf32>
    tpu.vector_store %arg4[%c0_31, %c1, %c0_32], %104 {strides = array<i32>} : memref<2x8x128xf32, #tpu.memory_space<vmem>>, vector<2x1x128xf32>,
    %105 = vector.extract_strided_slice %65 {offsets = [0, 2, 0], sizes = [2, 1, 128], strides = [1, 1, 1]} : vector<2x8x128xf32> to vector<2x1x128xf32>
    %106 = vector.shape_cast %105 : vector<2x1x128xf32> to vector<2x128xf32>
    %107 = arith.mulf %106, %98 : vector<2x128xf32>
    %108 = vector.extract_strided_slice %79 {offsets = [0, 2, 0], sizes = [2, 1, 128], strides = [1, 1, 1]} : vector<2x8x128xf32> to vector<2x1x128xf32>
    %109 = vector.shape_cast %108 : vector<2x1x128xf32> to vector<2x128xf32>
    %110 = arith.addf %107, %109 : vector<2x128xf32>
    %111 = vector.extract_strided_slice %76 {offsets = [0, 2, 0], sizes = [2, 1, 128], strides = [1, 1, 1]} : vector<2x8x128xf32> to vector<2x1x128xf32>
    %112 = vector.shape_cast %111 : vector<2x1x128xf32> to vector<2x128xf32>
    %113 = arith.mulf %110, %112 : vector<2x128xf32>
    %c0_33 = arith.constant 0 : index
    %c2 = arith.constant 2 : index
    %c0_34 = arith.constant 0 : index
    %114 = vector.load %arg4[%c0_33, %c2, %c0_34] : memref<2x8x128xf32, #tpu.memory_space<vmem>>, vector<2x1x128xf32>
    %115 = vector.shape_cast %114 : vector<2x1x128xf32> to vector<2x128xf32>
    %116 = vector.shape_cast %113 : vector<2x128xf32> to vector<2x1x128xf32>
    tpu.vector_store %arg4[%c0_33, %c2, %c0_34], %116 {strides = array<i32>} : memref<2x8x128xf32, #tpu.memory_space<vmem>>, vector<2x1x128xf32>,
    %117 = vector.extract_strided_slice %65 {offsets = [0, 3, 0], sizes = [2, 1, 128], strides = [1, 1, 1]} : vector<2x8x128xf32> to vector<2x1x128xf32>
    %118 = vector.shape_cast %117 : vector<2x1x128xf32> to vector<2x128xf32>
    %119 = arith.mulf %118, %110 : vector<2x128xf32>
    %120 = vector.extract_strided_slice %79 {offsets = [0, 3, 0], sizes = [2, 1, 128], strides = [1, 1, 1]} : vector<2x8x128xf32> to vector<2x1x128xf32>
    %121 = vector.shape_cast %120 : vector<2x1x128xf32> to vector<2x128xf32>
    %122 = arith.addf %119, %121 : vector<2x128xf32>
    %123 = vector.extract_strided_slice %76 {offsets = [0, 3, 0], sizes = [2, 1, 128], strides = [1, 1, 1]} : vector<2x8x128xf32> to vector<2x1x128xf32>
    %124 = vector.shape_cast %123 : vector<2x1x128xf32> to vector<2x128xf32>
    %125 = arith.mulf %122, %124 : vector<2x128xf32>
    %c0_35 = arith.constant 0 : index
    %c3 = arith.constant 3 : index
    %c0_36 = arith.constant 0 : index
    %126 = vector.load %arg4[%c0_35, %c3, %c0_36] : memref<2x8x128xf32, #tpu.memory_space<vmem>>, vector<2x1x128xf32>
    %127 = vector.shape_cast %126 : vector<2x1x128xf32> to vector<2x128xf32>
    %128 = vector.shape_cast %125 : vector<2x128xf32> to vector<2x1x128xf32>
    tpu.vector_store %arg4[%c0_35, %c3, %c0_36], %128 {strides = array<i32>} : memref<2x8x128xf32, #tpu.memory_space<vmem>>, vector<2x1x128xf32>,
    %129 = vector.extract_strided_slice %65 {offsets = [0, 4, 0], sizes = [2, 1, 128], strides = [1, 1, 1]} : vector<2x8x128xf32> to vector<2x1x128xf32>
    %130 = vector.shape_cast %129 : vector<2x1x128xf32> to vector<2x128xf32>
    %131 = arith.mulf %130, %122 : vector<2x128xf32>
    %132 = vector.extract_strided_slice %79 {offsets = [0, 4, 0], sizes = [2, 1, 128], strides = [1, 1, 1]} : vector<2x8x128xf32> to vector<2x1x128xf32>
    %133 = vector.shape_cast %132 : vector<2x1x128xf32> to vector<2x128xf32>
    %134 = arith.addf %131, %133 : vector<2x128xf32>
    %135 = vector.extract_strided_slice %76 {offsets = [0, 4, 0], sizes = [2, 1, 128], strides = [1, 1, 1]} : vector<2x8x128xf32> to vector<2x1x128xf32>
    %136 = vector.shape_cast %135 : vector<2x1x128xf32> to vector<2x128xf32>
    %137 = arith.mulf %134, %136 : vector<2x128xf32>
    %c0_37 = arith.constant 0 : index
    %c4 = arith.constant 4 : index
    %c0_38 = arith.constant 0 : index
    %138 = vector.load %arg4[%c0_37, %c4, %c0_38] : memref<2x8x128xf32, #tpu.memory_space<vmem>>, vector<2x1x128xf32>
    %139 = vector.shape_cast %138 : vector<2x1x128xf32> to vector<2x128xf32>
    %140 = vector.shape_cast %137 : vector<2x128xf32> to vector<2x1x128xf32>
    tpu.vector_store %arg4[%c0_37, %c4, %c0_38], %140 {strides = array<i32>} : memref<2x8x128xf32, #tpu.memory_space<vmem>>, vector<2x1x128xf32>,
    %141 = vector.extract_strided_slice %65 {offsets = [0, 5, 0], sizes = [2, 1, 128], strides = [1, 1, 1]} : vector<2x8x128xf32> to vector<2x1x128xf32>
    %142 = vector.shape_cast %141 : vector<2x1x128xf32> to vector<2x128xf32>
    %143 = arith.mulf %142, %134 : vector<2x128xf32>
    %144 = vector.extract_strided_slice %79 {offsets = [0, 5, 0], sizes = [2, 1, 128], strides = [1, 1, 1]} : vector<2x8x128xf32> to vector<2x1x128xf32>
    %145 = vector.shape_cast %144 : vector<2x1x128xf32> to vector<2x128xf32>
    %146 = arith.addf %143, %145 : vector<2x128xf32>
    %147 = vector.extract_strided_slice %76 {offsets = [0, 5, 0], sizes = [2, 1, 128], strides = [1, 1, 1]} : vector<2x8x128xf32> to vector<2x1x128xf32>
    %148 = vector.shape_cast %147 : vector<2x1x128xf32> to vector<2x128xf32>
    %149 = arith.mulf %146, %148 : vector<2x128xf32>
    %c0_39 = arith.constant 0 : index
    %c5 = arith.constant 5 : index
    %c0_40 = arith.constant 0 : index
    %150 = vector.load %arg4[%c0_39, %c5, %c0_40] : memref<2x8x128xf32, #tpu.memory_space<vmem>>, vector<2x1x128xf32>
    %151 = vector.shape_cast %150 : vector<2x1x128xf32> to vector<2x128xf32>
    %152 = vector.shape_cast %149 : vector<2x128xf32> to vector<2x1x128xf32>
    tpu.vector_store %arg4[%c0_39, %c5, %c0_40], %152 {strides = array<i32>} : memref<2x8x128xf32, #tpu.memory_space<vmem>>, vector<2x1x128xf32>,
    %153 = vector.extract_strided_slice %65 {offsets = [0, 6, 0], sizes = [2, 1, 128], strides = [1, 1, 1]} : vector<2x8x128xf32> to vector<2x1x128xf32>
    %154 = vector.shape_cast %153 : vector<2x1x128xf32> to vector<2x128xf32>
    %155 = arith.mulf %154, %146 : vector<2x128xf32>
    %156 = vector.extract_strided_slice %79 {offsets = [0, 6, 0], sizes = [2, 1, 128], strides = [1, 1, 1]} : vector<2x8x128xf32> to vector<2x1x128xf32>
    %157 = vector.shape_cast %156 : vector<2x1x128xf32> to vector<2x128xf32>
    %158 = arith.addf %155, %157 : vector<2x128xf32>
    %159 = vector.extract_strided_slice %76 {offsets = [0, 6, 0], sizes = [2, 1, 128], strides = [1, 1, 1]} : vector<2x8x128xf32> to vector<2x1x128xf32>
    %160 = vector.shape_cast %159 : vector<2x1x128xf32> to vector<2x128xf32>
    %161 = arith.mulf %158, %160 : vector<2x128xf32>
    %c0_41 = arith.constant 0 : index
    %c6 = arith.constant 6 : index
    %c0_42 = arith.constant 0 : index
    %162 = vector.load %arg4[%c0_41, %c6, %c0_42] : memref<2x8x128xf32, #tpu.memory_space<vmem>>, vector<2x1x128xf32>
    %163 = vector.shape_cast %162 : vector<2x1x128xf32> to vector<2x128xf32>
    %164 = vector.shape_cast %161 : vector<2x128xf32> to vector<2x1x128xf32>
    tpu.vector_store %arg4[%c0_41, %c6, %c0_42], %164 {strides = array<i32>} : memref<2x8x128xf32, #tpu.memory_space<vmem>>, vector<2x1x128xf32>,
    %165 = vector.extract_strided_slice %65 {offsets = [0, 7, 0], sizes = [2, 1, 128], strides = [1, 1, 1]} : vector<2x8x128xf32> to vector<2x1x128xf32>
    %166 = vector.shape_cast %165 : vector<2x1x128xf32> to vector<2x128xf32>
    %167 = arith.mulf %166, %158 : vector<2x128xf32>
    %168 = vector.extract_strided_slice %79 {offsets = [0, 7, 0], sizes = [2, 1, 128], strides = [1, 1, 1]} : vector<2x8x128xf32> to vector<2x1x128xf32>
    %169 = vector.shape_cast %168 : vector<2x1x128xf32> to vector<2x128xf32>
    %170 = arith.addf %167, %169 : vector<2x128xf32>
    %171 = vector.extract_strided_slice %76 {offsets = [0, 7, 0], sizes = [2, 1, 128], strides = [1, 1, 1]} : vector<2x8x128xf32> to vector<2x1x128xf32>
    %172 = vector.shape_cast %171 : vector<2x1x128xf32> to vector<2x128xf32>
    %173 = arith.mulf %170, %172 : vector<2x128xf32>
    %c0_43 = arith.constant 0 : index
    %c7 = arith.constant 7 : index
    %c0_44 = arith.constant 0 : index
    %174 = vector.load %arg4[%c0_43, %c7, %c0_44] : memref<2x8x128xf32, #tpu.memory_space<vmem>>, vector<2x1x128xf32>
    %175 = vector.shape_cast %174 : vector<2x1x128xf32> to vector<2x128xf32>
    %176 = vector.shape_cast %173 : vector<2x128xf32> to vector<2x1x128xf32>
    tpu.vector_store %arg4[%c0_43, %c7, %c0_44], %176 {strides = array<i32>} : memref<2x8x128xf32, #tpu.memory_space<vmem>>, vector<2x1x128xf32>,
    %c0_45 = arith.constant 0 : index
    %c0_46 = arith.constant 0 : index
    %177 = vector.load %arg5[%c0_45, %c0_46] : memref<2x128xf32, #tpu.memory_space<vmem>>, vector<2x128xf32>
    tpu.vector_store %arg5[%c0_45, %c0_46], %170 {strides = array<i32>} : memref<2x128xf32, #tpu.memory_space<vmem>>, vector<2x128xf32>,
    return
  }
  func.func @transform_0(%arg0: i32) -> (i32, i32, i32) {
    %c0_i32 = arith.constant 0 : i32
    %c0_i32_0 = arith.constant 0 : i32
    %c0_i32_1 = arith.constant 0 : i32
    return %c0_i32, %arg0, %c0_i32_0 : i32, i32, i32
  }
  func.func @transform_1(%arg0: i32) -> (i32, i32) {
    %c0_i32 = arith.constant 0 : i32
    %c0_i32_0 = arith.constant 0 : i32
    %c0_i32_1 = arith.constant 0 : i32
    return %c0_i32, %c0_i32_0 : i32, i32
  }
  func.func @transform_2(%arg0: i32) -> (i32, i32) {
    %c0_i32 = arith.constant 0 : i32
    %c0_i32_0 = arith.constant 0 : i32
    %c0_i32_1 = arith.constant 0 : i32
    return %c0_i32, %c0_i32_0 : i32, i32
  }
  func.func @transform_3(%arg0: i32) -> (i32, i32, i32) {
    %c0_i32 = arith.constant 0 : i32
    %c0_i32_0 = arith.constant 0 : i32
    %c0_i32_1 = arith.constant 0 : i32
    return %c0_i32, %arg0, %c0_i32_0 : i32, i32, i32
  }
}

</mosaic_0001>

<llo_original>
// kernel: tpu_custom_call.1
$region0: #{tpu_custom_call.1}
  #allocation0 [shape = 'u32[]', space=smem, size = 0x4, offset = 0x4, fixed_abs, tag = 'smem constant byte address 0x4 - core index']
  #allocation1 [shape = 'u32[144,128]{1,0:T(1,128)}', space=vmem, size = 0x12000, scoped, tag = 'internal scratch']
  #allocation2 [shape = 'f32[2,128]{1,0:T(2,128)}', space=vmem, size = 0x400, scoped, tag = 'scratch operand']
  %s0 = inlined_call_operand.hbm [shape: f32[2,8,32], index: 0, kind: input, shape index: {}]
  %s1 = inlined_call_operand.hbm [shape: bf16[32,384], index: 1, kind: input, shape index: {}]
  %s2 = inlined_call_operand.vmem [shape: f32[1,384], index: 2, kind: input, shape index: {}]
  %s3 = inlined_call_operand.hbm [shape: f32[2,8,128], index: 3, kind: output, shape index: {}]
  %s4 = sld [smem:[#allocation0]]
  $region34: #{tpu_custom_call.1} parent=0
    _
  %s6 = ssub.s32 1, %s4
  %s7 = scalar_select 0, %s6, %s4
  $region1: #{tpu_custom_call.1} parent=0
    #allocation3 [shape = 'u8[8192]{0}', space=vmem, size = 0x2000, scoped, tag = 'input window, operand 0, single buffered']
    #allocation4 [shape = 's32[1]{0}', space=sflag, size = 0x4, scoped, tag = 'scoped memory for tpu_custom_call.1']
    #allocation5 [shape = 's32[1]{0}', space=sflag, size = 0x4, scoped, tag = 'scoped memory for tpu_custom_call.1']
    #allocation6 [shape = 'u8[24576]{0}', space=vmem, size = 0x6000, scoped, tag = 'input window, operand 1, single buffered']
    #allocation7 [shape = 's32[1]{0}', space=sflag, size = 0x4, scoped, tag = 'scoped memory for tpu_custom_call.1']
    #allocation8 [shape = 'u8[8192]{0}', space=vmem, size = 0x2000, scoped, tag = 'output window, operand 0, single buffered']
    %8 = vsyncpa [#allocation4], 0
    %9 = vsyncpa [#allocation7], 0
    %10 = vsyncpa [#allocation5], 0
    // Predicated region
    $region2: #{tpu_custom_call.1} parent=1 // pred_check
      _
    $region3: #{tpu_custom_call.1} parent=1 // pred_check_branch
      %12 = sbr.rel (0) target = $region5
    $region4: #{tpu_custom_call.1} parent=1 // pred_region
      %s14 = ssub.s32 256, 256
      %15 = vsyncadd [#allocation4], %s14
      %s16 = sshll.u32 [#allocation3], 4
      %s17 = int_to_ptr.vmem [resolvable:$true] %s16
      %22 = dma.hbm_to_vmem [thread:$0]  %s0, 256, %s17, [#allocation4], 128, 128, 8
    $region5: #{tpu_custom_call.1} parent=1 // pred_fallthru
      _
    // Predicated region
    $region6: #{tpu_custom_call.1} parent=1 // pred_check
      _
    $region7: #{tpu_custom_call.1} parent=1 // pred_check_branch
      %24 = sbr.rel (0) target = $region9
    $region8: #{tpu_custom_call.1} parent=1 // pred_region
      %s26 = ssub.s32 768, 768
      %27 = vsyncadd [#allocation7], %s26
      %s28 = sshll.u32 [#allocation6], 4
      %s29 = int_to_ptr.vmem [resolvable:$true] %s28
      %34 = dma.hbm_to_vmem [thread:$0]  %s1, 768, %s29, [#allocation7], 192, 192, 12
    $region9: #{tpu_custom_call.1} parent=1 // pred_fallthru
      _
    // Predicated region
    $region10: #{tpu_custom_call.1} parent=1 // pred_check
      _
    $region11: #{tpu_custom_call.1} parent=1 // pred_check_branch
      %36 = sbr.rel (0) target = $region13
    $region12: #{tpu_custom_call.1} parent=1 // pred_region
      _
    $region13: #{tpu_custom_call.1} parent=1 // pred_fallthru
      _
    // Predicated region
    $region14: #{tpu_custom_call.1} parent=1 // pred_check
      _
    $region15: #{tpu_custom_call.1} parent=1 // pred_check_branch
      %38 = sbr.rel (0) target = $region17
    $region16: #{tpu_custom_call.1} parent=1 // pred_region
      %39 = dma.done [#allocation4], 256
    $region17: #{tpu_custom_call.1} parent=1 // pred_fallthru
      _
    // Predicated region
    $region18: #{tpu_custom_call.1} parent=1 // pred_check
      _
    $region19: #{tpu_custom_call.1} parent=1 // pred_check_branch
      %41 = sbr.rel (0) target = $region21
    $region20: #{tpu_custom_call.1} parent=1 // pred_region
      %42 = dma.done [#allocation7], 768
    $region21: #{tpu_custom_call.1} parent=1 // pred_fallthru
      _
    %p44 = scmp.eq.s32.totalorder 0, 0
    // Predicated region
    $region22: #{tpu_custom_call.1} parent=1 // pred_check
      %p45 = pneg %p44
    $region23: #{tpu_custom_call.1} parent=1 // pred_check_branch
      %47 = sbr.rel (%p45) target = $region25
    $region24: #{tpu_custom_call.1} parent=1 // pred_region
      %48 = vst [vmem:[#allocation2] sm:$0x3] 0.0
    $region25: #{tpu_custom_call.1} parent=1 // pred_fallthru
      _
    %v49 = vld [vmem:[#allocation3] sm:$0xff]
    %v50 = vld [vmem:[#allocation3 + $0x8] sm:$0xff]
    %vm51 = vcmask 261120
    %v52 = vsel %vm51, %v49, 0.0
    %53 = vadd.xlane.f32.xlu0 %v52
    %v54 = vpop.xlane.xlu0 %53
    %v55 = vsel %vm51, %v50, 0.0
    %56 = vadd.xlane.f32.xlu0 %v55
    %v57 = vpop.xlane.xlu0 %56
    %v58 = vrcp.pop 32.0
    %v59 = vmul.f32 %v54, %v58
    %v60 = vmul.f32 %v57, %v58
    %v61 = vsub.f32 %v49, %v59
    %v62 = vsub.f32 %v50, %v60
    %v63 = vmul.f32 %v61, %v61
    %v64 = vmul.f32 %v62, %v62
    %v65 = vsel %vm51, %v63, 0.0
    %66 = vadd.xlane.f32.xlu0 %v65
    %v67 = vpop.xlane.xlu0 %66
    %v68 = vsel %vm51, %v64, 0.0
    %69 = vadd.xlane.f32.xlu0 %v68
    %v70 = vpop.xlane.xlu0 %69
    %v71 = vmul.f32 %v67, %v58
    %v72 = vmul.f32 %v70, %v58
    %v73 = vadd.f32 %v71, 1e-08
    %v74 = vadd.f32 %v72, 1e-08
    %v75 = vmax.f32 %v73, 1e-10
    %v76 = vmax.f32 %v74, 1e-10
    %v77 = vrsqrt.pop %v75
    %v78 = vmul.f32 %v75, %v77
    %vm79 = vcmp.eq.f32.partialorder %v75, inf
    %v80 = vsel %vm79, %v75, %v78
    %vm81 = vcmp.eq.f32.partialorder %v75, 0.0
    %v82 = vand.u32 %v75, 2147483648
    %v83 = vsel %vm81, %v82, %v80
    %v84 = vrsqrt.pop %v76
    %v85 = vmul.f32 %v76, %v84
    %vm86 = vcmp.eq.f32.partialorder %v76, inf
    %v87 = vsel %vm86, %v76, %v85
    %vm88 = vcmp.eq.f32.partialorder %v76, 0.0
    %v89 = vand.u32 %v76, 2147483648
    %v90 = vsel %vm88, %v89, %v87
    %v91 = vrcp.pop %v83
    %v92 = vmul.f32 1.0, %v91
    %v93 = vrcp.pop %v90
    %v94 = vmul.f32 1.0, %v93
    %v95 = vmul.f32 %v92, %v61
    %v96 = vmul.f32 %v94, %v62
    %vm97 = vcmp.ne.f32.partialorder %v95, %v95
    %vm98 = vcmp.ne.f32.partialorder %v96, %v96
    %v99 = vsel %vm97, 0.0, %v95
    %v100 = vsel %vm98, 0.0, %v96
    %v101 = vand.u32 2147483647, %v99
    %v102 = vand.u32 2147483647, %v100
    %v103 = vsel %vm51, %v101, -inf
    %104 = vmax.xlane.f32.xlu0 %v103
    %v105 = vpop.xlane.xlu0 %104
    %v106 = vsel %vm51, %v102, -inf
    %107 = vmax.xlane.f32.xlu0 %v106
    %v108 = vpop.xlane.xlu0 %107
    %v109 = vmax.f32 %v105, %v108
    %vm110 = vcmp.eq.f32.partialorder %v109, 0.0
    %vm111 = vcmp.ne.f32.partialorder %v109, %v109
    %vm112 = vmor %vm110, %vm111
    %v113 = vrcp.pop 127.0
    %v114 = vmul.f32 %v109, %v113
    %v115 = vsel %vm112, 1.0, %v114
    %v116 = vrcp.pop %v115
    %v117 = vmul.f32 %v99, %v116
    %v118 = vmul.f32 %v100, %v116
    %v119 = vround.ne.pseudo %v117
    %v120 = vround.ne.pseudo %v118
    %v121 = vmax.f32 %v119, -128.0
    %v122 = vmax.f32 %v120, -128.0
    %v123 = vmin.f32 %v121, 127.0
    %v124 = vmin.f32 %v122, 127.0
    %v125 = vpack.c.bf16 %v124, %v123
    %v126 = vld [vmem:[#allocation6] sm:$0xff]
    %v127 = vld [vmem:[#allocation6 + $0x8] sm:$0xf]
    %v128 = vld [vmem:[#allocation6 + $0xc] sm:$0xff]
    %v129 = vld [vmem:[#allocation6 + $0x14] sm:$0xf]
    %v130 = vld [vmem:[#allocation6 + $0x18] sm:$0xff]
    %v131 = vld [vmem:[#allocation6 + $0x20] sm:$0xf]
    %v132 = vld [vmem:[#allocation6 + $0x24] sm:$0xff]
    %v133 = vld [vmem:[#allocation6 + $0x2c] sm:$0xf]
    %v142 = vunpack.c.l.b16 %v126
    %v143 = vunpack.c.h.b16 %v126
    %v144 = vunpack.c.l.b16 %v127
    %v145 = vunpack.c.l.b16 %v128
    %v146 = vunpack.c.h.b16 %v128
    %v147 = vunpack.c.l.b16 %v129
    %v148 = vunpack.c.l.b16 %v130
    %v149 = vunpack.c.h.b16 %v130
    %v150 = vunpack.c.l.b16 %v131
    %v151 = vunpack.c.l.b16 %v132
    %v152 = vunpack.c.h.b16 %v132
    %v153 = vunpack.c.l.b16 %v133
    %v154 = vpack.c.b16 %v145, %v142
    %v155 = vpack.c.b16 %v146, %v143
    %v156 = vpack.c.b16 %v147, %v144
    %v157 = vpack.c.b16 %v151, %v148
    %v158 = vpack.c.b16 %v152, %v149
    %v159 = vpack.c.b16 %v153, %v150
    %v167 = vsel %vm51, %v125, 0
    %169 = vmatprep.subr.bf16.mxu0 0
    %170 = vmatpush1.bf16.msra.mxu0 0
    %171 = vmatprep.subr.bf16.mxu0 0
    %172 = vmatpush1.bf16.msra.mxu0 0
    %173 = vmatprep.subr.bf16.mxu0 0
    %174 = vmatpush1.bf16.msra.mxu0 0
    %175 = vmatprep.subr.bf16.mxu0 0
    %176 = vmatpush1.bf16.msra.mxu0 0
    %177 = vmatprep.subr.bf16.mxu0 0
    %178 = vmatpush1.bf16.msra.mxu0 0
    %179 = vmatprep.subr.bf16.mxu0 0
    %180 = vmatpush1.bf16.msra.mxu0 0
    %181 = vmatprep.subr.bf16.mxu0 %v158
    %182 = vmatpush1.bf16.msra.mxu0 %v157
    %183 = vmatprep.subr.bf16.mxu0 %v155
    %184 = vmatpush1.bf16.msra.mxu0 %v154
    %185 = vmatprep.subr.bf16.mxu0 0
    %186 = vmatpush2.bf16.msra.mxu0 0
    %187 = vmatprep.subr.bf16.mxu0 0
    %188 = vmatpush2.bf16.msra.mxu0 0
    %189 = vmatprep.subr.bf16.mxu0 0
    %190 = vmatpush2.bf16.msra.mxu0 0
    %191 = vmatprep.subr.bf16.mxu0 0
    %192 = vmatpush2.bf16.msra.mxu0 0
    %193 = vmatprep.subr.bf16.mxu0 0
    %194 = vmatpush2.bf16.msra.mxu0 0
    %195 = vmatprep.subr.bf16.mxu0 0
    %196 = vmatpush2.bf16.msra.mxu0 0
    %197 = vmatprep.subr.bf16.mxu0 0
    %198 = vmatpush2.bf16.msra.mxu0 0
    %199 = vmatprep.subr.bf16.mxu0 0
    %200 = vmatpush2.bf16.msra.mxu0 0
    %201 = vmatprep.mubr.bf16.mxu0 0
    %202 = vmatmul.mubr.bf16.gmra.mxu0 %v167
    %v203 = vpop.f32.mrf.mxu0
    %v204 = vadd.f32 0.0, %v203
    %v205 = vpop.f32.mrf.mxu0
    %v206 = vadd.f32 0.0, %v205
    %v207 = vpop.f32.mrf.mxu0
    %v208 = vadd.f32 0.0, %v207
    %v209 = vpop.f32.mrf.mxu0
    %v210 = vadd.f32 0.0, %v209
    %211 = vdwg.mxu0
    %212 = vmatprep.subr.bf16.mxu0 0
    %213 = vmatpush1.bf16.msra.mxu0 0
    %214 = vmatprep.subr.bf16.mxu0 0
    %215 = vmatpush1.bf16.msra.mxu0 0
    %216 = vmatprep.subr.bf16.mxu0 0
    %217 = vmatpush1.bf16.msra.mxu0 0
    %218 = vmatprep.subr.bf16.mxu0 0
    %219 = vmatpush1.bf16.msra.mxu0 0
    %220 = vmatprep.subr.bf16.mxu0 0
    %221 = vmatpush1.bf16.msra.mxu0 0
    %222 = vmatprep.subr.bf16.mxu0 0
    %223 = vmatpush1.bf16.msra.mxu0 0
    %224 = vmatprep.subr.bf16.mxu0 0
    %225 = vmatpush1.bf16.msra.mxu0 %v159
    %226 = vmatprep.subr.bf16.mxu0 0
    %227 = vmatpush1.bf16.msra.mxu0 %v156
    %228 = vmatprep.subr.bf16.mxu0 0
    %229 = vmatpush2.bf16.msra.mxu0 0
    %230 = vmatprep.subr.bf16.mxu0 0
    %231 = vmatpush2.bf16.msra.mxu0 0
    %232 = vmatprep.subr.bf16.mxu0 0
    %233 = vmatpush2.bf16.msra.mxu0 0
    %234 = vmatprep.subr.bf16.mxu0 0
    %235 = vmatpush2.bf16.msra.mxu0 0
    %236 = vmatprep.subr.bf16.mxu0 0
    %237 = vmatpush2.bf16.msra.mxu0 0
    %238 = vmatprep.subr.bf16.mxu0 0
    %239 = vmatpush2.bf16.msra.mxu0 0
    %240 = vmatprep.subr.bf16.mxu0 0
    %241 = vmatpush2.bf16.msra.mxu0 0
    %242 = vmatprep.subr.bf16.mxu0 0
    %243 = vmatpush2.bf16.msra.mxu0 0
    %244 = vmatprep.mubr.bf16.mxu0 0
    %245 = vmatmul.mubr.bf16.gmra.mxu0 %v167
    %v246 = vpop.f32.mrf.mxu0
    %v247 = vadd.f32 0.0, %v246
    %v248 = vpop.f32.mrf.mxu0
    %v249 = vpop.f32.mrf.mxu0
    %v250 = vadd.f32 0.0, %v249
    %v251 = vpop.f32.mrf.mxu0
    %252 = vdwg.mxu0
    %v253 = vmul.f32 %v204, %v115
    %v254 = vmul.f32 %v206, %v115
    %v255 = vmul.f32 %v247, %v115
    %v256 = vmul.f32 %v208, %v115
    %v257 = vmul.f32 %v210, %v115
    %v258 = vmul.f32 %v250, %v115
    %v259 = vld [vmem:[%s2] sm:$0x7]
    %v261 = vlaneseq
    %v262 = vshrl.u32 %v261, 7
    %v263 = vsub.s32 0, %v262
    %v264 = vrot.slane %v259, %v263
    %v265 = vlaneseq
    %v266 = vshrl.u32 %v265, 7
    %v267 = vsub.s32 1, %v266
    %v268 = vrot.slane %v259, %v267
    %v269 = vlaneseq
    %v270 = vshrl.u32 %v269, 7
    %v271 = vsub.s32 2, %v270
    %v272 = vrot.slane %v259, %v271
    %v276 = vadd.f32 %v253, %v264
    %v277 = vadd.f32 %v254, %v268
    %v278 = vadd.f32 %v255, %v272
    %v279 = vadd.f32 %v256, %v264
    %v280 = vadd.f32 %v257, %v268
    %v281 = vadd.f32 %v258, %v272
    %v282 = vxor.u32 %v276, 2147483648
    %v283 = vxor.u32 %v279, 2147483648
    %v284 = vmul.f32 %v282, 1.442695
    %v285 = vpow.pop %v284
    %v286 = vmul.f32 %v283, 1.442695
    %v287 = vpow.pop %v286
    %v288 = vadd.f32 %v285, 1.0
    %v289 = vadd.f32 %v287, 1.0
    %v290 = vrcp.pop %v288
    %v291 = vmul.f32 1.0, %v290
    %v292 = vrcp.pop %v289
    %v293 = vmul.f32 1.0, %v292
    %v294 = vxor.u32 %v277, 2147483648
    %v295 = vxor.u32 %v280, 2147483648
    %v296 = vmul.f32 %v294, 1.442695
    %v297 = vpow.pop %v296
    %v298 = vmul.f32 %v295, 1.442695
    %v299 = vpow.pop %v298
    %v300 = vadd.f32 %v297, 1.0
    %v301 = vadd.f32 %v299, 1.0
    %v302 = vrcp.pop %v300
    %v303 = vmul.f32 1.0, %v302
    %v304 = vrcp.pop %v301
    %v305 = vmul.f32 1.0, %v304
    %v306 = vmul.f32 %v277, %v303
    %v307 = vmul.f32 %v280, %v305
    %v308 = vxor.u32 %v278, 2147483648
    %v309 = vxor.u32 %v281, 2147483648
    %v310 = vmul.f32 %v308, 1.442695
    %v311 = vpow.pop %v310
    %v312 = vmul.f32 %v309, 1.442695
    %v313 = vpow.pop %v312
    %v314 = vadd.f32 %v311, 1.0
    %v315 = vadd.f32 %v313, 1.0
    %v316 = vrcp.pop %v314
    %v317 = vmul.f32 1.0, %v316
    %v318 = vrcp.pop %v315
    %v319 = vmul.f32 1.0, %v318
    %v320 = vsub.f32 1.0, %v291
    %v321 = vsub.f32 1.0, %v293
    %v322 = vmul.f32 %v320, %v306
    %v323 = vmul.f32 %v321, %v307
    %v324 = vld [vmem:[#allocation2] sm:$0x3]
    %v326 = vrot.slane %v324, 1
    %v329 = vmul.f32 %v291, %v324
    %v330 = vmul.f32 %v293, %v326
    %v331 = vadd.f32 %v329, %v322
    %v332 = vadd.f32 %v330, %v323
    %v333 = vmul.f32 %v331, %v317
    %v334 = vmul.f32 %v332, %v319
    %335 = vst [vmem:[#allocation8] sm:$0x1] %v333
    %336 = vst [vmem:[#allocation8 + $0x8] sm:$0x1] %v334
    %v339 = vrot.slane %v331, 7
    %v340 = vrot.slane %v332, 7
    %v343 = vmul.f32 %v291, %v339
    %v344 = vmul.f32 %v293, %v340
    %v345 = vadd.f32 %v343, %v322
    %v346 = vadd.f32 %v344, %v323
    %v347 = vmul.f32 %v345, %v317
    %v348 = vmul.f32 %v346, %v319
    %349 = vst [vmem:[#allocation8] sm:$0x2] %v347
    %350 = vst [vmem:[#allocation8 + $0x8] sm:$0x2] %v348
    %v353 = vrot.slane %v345, 7
    %v354 = vrot.slane %v346, 7
    %v357 = vmul.f32 %v291, %v353
    %v358 = vmul.f32 %v293, %v354
    %v359 = vadd.f32 %v357, %v322
    %v360 = vadd.f32 %v358, %v323
    %v361 = vmul.f32 %v359, %v317
    %v362 = vmul.f32 %v360, %v319
    %363 = vst [vmem:[#allocation8] sm:$0x4] %v361
    %364 = vst [vmem:[#allocation8 + $0x8] sm:$0x4] %v362
    %v367 = vrot.slane %v359, 7
    %v368 = vrot.slane %v360, 7
    %v371 = vmul.f32 %v291, %v367
    %v372 = vmul.f32 %v293, %v368
    %v373 = vadd.f32 %v371, %v322
    %v374 = vadd.f32 %v372, %v323
    %v375 = vmul.f32 %v373, %v317
    %v376 = vmul.f32 %v374, %v319
    %377 = vst [vmem:[#allocation8] sm:$0x8] %v375
    %378 = vst [vmem:[#allocation8 + $0x8] sm:$0x8] %v376
    %v381 = vrot.slane %v373, 7
    %v382 = vrot.slane %v374, 7
    %v385 = vmul.f32 %v291, %v381
    %v386 = vmul.f32 %v293, %v382
    %v387 = vadd.f32 %v385, %v322
    %v388 = vadd.f32 %v386, %v323
    %v389 = vmul.f32 %v387, %v317
    %v390 = vmul.f32 %v388, %v319
    %391 = vst [vmem:[#allocation8] sm:$0x10] %v389
    %392 = vst [vmem:[#allocation8 + $0x8] sm:$0x10] %v390
    %v395 = vrot.slane %v387, 7
    %v396 = vrot.slane %v388, 7
    %v399 = vmul.f32 %v291, %v395
    %v400 = vmul.f32 %v293, %v396
    %v401 = vadd.f32 %v399, %v322
    %v402 = vadd.f32 %v400, %v323
    %v403 = vmul.f32 %v401, %v317
    %v404 = vmul.f32 %v402, %v319
    %405 = vst [vmem:[#allocation8] sm:$0x20] %v403
    %406 = vst [vmem:[#allocation8 + $0x8] sm:$0x20] %v404
    %v409 = vrot.slane %v401, 7
    %v410 = vrot.slane %v402, 7
    %v413 = vmul.f32 %v291, %v409
    %v414 = vmul.f32 %v293, %v410
    %v415 = vadd.f32 %v413, %v322
    %v416 = vadd.f32 %v414, %v323
    %v417 = vmul.f32 %v415, %v317
    %v418 = vmul.f32 %v416, %v319
    %419 = vst [vmem:[#allocation8] sm:$0x40] %v417
    %420 = vst [vmem:[#allocation8 + $0x8] sm:$0x40] %v418
    %v423 = vrot.slane %v415, 7
    %v424 = vrot.slane %v416, 7
    %v427 = vmul.f32 %v291, %v423
    %v428 = vmul.f32 %v293, %v424
    %v429 = vadd.f32 %v427, %v322
    %v430 = vadd.f32 %v428, %v323
    %v431 = vmul.f32 %v429, %v317
    %v432 = vmul.f32 %v430, %v319
    %433 = vst [vmem:[#allocation8] sm:$0x80] %v431
    %434 = vst [vmem:[#allocation8 + $0x8] sm:$0x80] %v432
    %v437 = vrot.slane %v430, 7
    %440 = vst [vmem:[#allocation2 - $0x7] sm:$0x80] %v429
    %441 = vst [vmem:[#allocation2 + $0x1] sm:$0x1] %v437
    // Predicated region
    $region26: #{tpu_custom_call.1} parent=1 // pred_check
      _
    $region27: #{tpu_custom_call.1} parent=1 // pred_check_branch
      %443 = sbr.rel (0) target = $region29
    $region28: #{tpu_custom_call.1} parent=1 // pred_region
      %s445 = ssub.s32 256, 256
      %446 = vsyncadd [#allocation5], %s445
      %s447 = sshll.u32 [#allocation8], 4
      %s448 = int_to_ptr.vmem [resolvable:$true] %s447
      %453 = dma.vmem_to_hbm [thread:$0]  %s448, 256, %s3, [#allocation5], 128, 128, 8
    $region29: #{tpu_custom_call.1} parent=1 // pred_fallthru
      _
    // Predicated region
    $region30: #{tpu_custom_call.1} parent=1 // pred_check
      _
    $region31: #{tpu_custom_call.1} parent=1 // pred_check_branch
      %455 = sbr.rel (0) target = $region33
    $region32: #{tpu_custom_call.1} parent=1 // pred_region
      %456 = dma.done [#allocation5], 256
    $region33: #{tpu_custom_call.1} parent=1 // pred_fallthru
      _
    %457 = vsyncpa [#allocation4], 1
    %458 = vsyncpa [#allocation7], 1
    %459 = vsyncpa [#allocation5], 1

</llo_original>
